<compile_context>
chip_gen: v7x
topology: tpu7x:2x2x1
jax: 0.10.0
libtpu: 0.0.40
codegen_flags: <defaults>
</compile_context>

<pallas_src>
import functools

import jax
import jax.numpy as jnp
from jax.experimental import pallas as pl
from jax.experimental.pallas import tpu as pltpu


def _round_up(x, m):
    return pl.cdiv(x, m) * m


# ---------------------------------------------------------------------------
# Kernel: full coupling forward for one (D, TB) batch tile, batch-last layout.
# refs = (params, xT [, logpT], yT [, logpT_out])
# ---------------------------------------------------------------------------
def _coupling_kernel(*refs, d1, out_dim, hid, col_a, reverse, swap, has_logpx):
    if has_logpx:
        p_ref, x_ref, lp_ref, y_ref, lp_out_ref = refs
    else:
        p_ref, x_ref, y_ref = refs
        lp_ref = lp_out_ref = None

    xt = x_ref[...].astype(jnp.float32)                # (D, TB), lane-dense

    # ---- swap (torch: x = cat([x[:, d1:], x[:, :d1]], 1)) folded in-kernel.
    if swap:
        if d1 == out_dim:                              # even d: pure row slices
            x1, x2 = xt[d1:, :], xt[:d1, :]
        else:                                          # odd d: torch mixes halves
            xsw = jnp.concatenate([xt[d1:, :], xt[:d1, :]], axis=0)
            x1, x2 = xsw[:d1, :], xsw[d1:, :]
    else:
        x1, x2 = xt[:d1, :], xt[d1:, :]

    # ---- layer 1: (hid x d1). K is tiny -> VPU broadcast-MACs, not the MXU.
    b1 = p_ref[:hid, d1:d1 + 1]                        # (hid, 1)
    if d1 <= 8:
        h = p_ref[:hid, 0:1] * x1[0:1, :]
        for k in range(1, d1):
            h = h + p_ref[:hid, k:k + 1] * x1[k:k + 1, :]
        h = h + b1
    else:
        h = jnp.dot(p_ref[:hid, :d1], x1,
                    preferred_element_type=jnp.float32) + b1
    h = jnp.maximum(h, 0.0)

    # ---- layer 2: hid x hid — the only matmul worth the MXU.
    w2 = p_ref[:hid, col_a:col_a + hid]                # 128-lane aligned slice
    b2 = p_ref[:hid, col_a + hid:col_a + hid + 1]
    h = jnp.dot(w2, h, preferred_element_type=jnp.float32) + b2
    h = jnp.maximum(h, 0.0)

    # ---- layer 3: (2*out_dim rows, zero-padded to 8) x hid; K=64 contraction.
    row3 = _round_up(hid, 8)
    r3 = _round_up(2 * out_dim, 8)
    w3 = p_ref[row3:row3 + r3, :hid]                   # (r3, hid), rows >2*out_dim are 0
    b3 = p_ref[row3:row3 + r3, hid:hid + 1]
    s_t = jnp.dot(w3, h, preferred_element_type=jnp.float32) + b3   # (r3, TB)

    z = s_t[:out_dim, :] + 2.0                         # pre-sigmoid scale logits
    shift = s_t[out_dim:2 * out_dim, :]

    if not reverse:
        scale = jax.nn.sigmoid(z)                      # EUP logistic
        y2 = x2 * scale + shift
    else:
        inv_scale = 1.0 + jnp.exp(-z)                  # exact 1/sigmoid(z), no divide
        y2 = (x2 - shift) * inv_scale

    # ---- lane-dense (full 128-lane) output stores; swap handled by row offsets.
    if swap:
        y_ref[:out_dim, :] = y2.astype(y_ref.dtype)
        y_ref[out_dim:, :] = x1.astype(y_ref.dtype)
    else:
        y_ref[:d1, :] = x1.astype(y_ref.dtype)
        y_ref[d1:, :] = y2.astype(y_ref.dtype)

    if has_logpx:
        # log sigmoid(z) = -softplus(-z): stable, one exp + one log (EUP).
        log_scale = -(jnp.maximum(-z, 0.0) + jnp.log(1.0 + jnp.exp(-jnp.abs(z))))
        logdet = jnp.sum(log_scale, axis=0, keepdims=True)          # (1, TB)
        dlp = logdet if reverse else -logdet
        lp_out_ref[...] = (lp_ref[...].astype(jnp.float32) + dlp).astype(lp_out_ref.dtype)


# ---------------------------------------------------------------------------
# Parameters: torch layout (out, in) weights, zero biases, packed into one slab.
# ---------------------------------------------------------------------------
def init_coupling_params(d, intermediate_dim=64, w_init_sigma=0.001, seed=0):
    d1 = d - d // 2
    out_dim = d - d1
    hid = intermediate_dim
    key = jax.random.PRNGKey(seed)
    k1, k2, k3 = jax.random.split(key, 3)
    # torch nn.Linear stores (out_features, in_features); the batch-last math
    # h = W @ x + b uses exactly that layout, so no transposition is needed.
    w1 = (w_init_sigma * jax.random.normal(k1, (hid, d1))).astype(jnp.float32)
    b1 = jnp.zeros((hid,), jnp.float32)
    w2 = (w_init_sigma * jax.random.normal(k2, (hid, hid))).astype(jnp.float32)
    b2 = jnp.zeros((hid,), jnp.float32)
    w3 = (w_init_sigma * jax.random.normal(k3, (2 * out_dim, hid))).astype(jnp.float32)
    b3 = jnp.zeros((2 * out_dim,), jnp.float32)

    # Pack everything into a single VMEM-resident slab (one DMA per call):
    #   rows [0, hid):        [ w1 | b1 | <pad to col_a> | w2 | b2 ]
    #   rows [row3, row3+r3): [ w3 | b3 ]   (zero-padded to 8 rows for the MXU)
    col_a = _round_up(d1 + 1, 128)
    row3 = _round_up(hid, 8)
    r3 = _round_up(2 * out_dim, 8)
    R = row3 + r3
    C = col_a + _round_up(hid + 1, 128)
    packed = jnp.zeros((R, C), jnp.float32)
    packed = packed.at[:hid, :d1].set(w1)
    packed = packed.at[:hid, d1].set(b1)
    packed = packed.at[:hid, col_a:col_a + hid].set(w2)
    packed = packed.at[:hid, col_a + hid].set(b2)
    packed = packed.at[row3:row3 + 2 * out_dim, :hid].set(w3)
    packed = packed.at[row3:row3 + 2 * out_dim, hid].set(b3)

    return dict(d=d, d1=d1, out_dim=out_dim, hid=hid, col_a=col_a,
                packed=packed,
                w1=w1, b1=b1, w2=w2, b2=b2, w3=w3, b3=b3)


# ---------------------------------------------------------------------------
# Wrapper: (B, D) torch-style interface; batch-last + batch-tiled kernel inside.
# ---------------------------------------------------------------------------
def coupling_forward(params, x, logpx=None, reverse=False, swap=False, block_b=2048):
    d1, out_dim, hid = params["d1"], params["out_dim"], params["hid"]
    col_a = params["col_a"]
    packed = params["packed"]
    B, D = x.shape
    assert D == d1 + out_dim

    block_b = _round_up(block_b, 128)
    tb = min(block_b, _round_up(B, 128))
    bp = _round_up(B, tb)
    ntiles = bp // tb

    # batch-last layout for lane-dense kernel I/O (interface stays (B, D)).
    xT = x.astype(jnp.float32).T                       # (D, B)
    if bp != B:
        xT = jnp.pad(xT, ((0, 0), (0, bp - B)))

    has_logpx = logpx is not None
    kernel = functools.partial(
        _coupling_kernel, d1=d1, out_dim=out_dim, hid=hid, col_a=col_a,
        reverse=bool(reverse), swap=bool(swap), has_logpx=has_logpx)

    R, C = packed.shape
    param_spec = pl.BlockSpec((R, C), lambda i: (0, 0))   # resident across tiles
    x_spec = pl.BlockSpec((D, tb), lambda i: (0, i))
    y_spec = pl.BlockSpec((D, tb), lambda i: (0, i))
    lp_spec = pl.BlockSpec((1, tb), lambda i: (0, i))

    in_specs = [param_spec, x_spec]
    inputs = [packed, xT]
    out_shape = [jax.ShapeDtypeStruct((D, bp), x.dtype)]
    out_specs = [y_spec]
    if has_logpx:
        lpT = jnp.reshape(logpx, (1, B)).astype(jnp.float32)
        if bp != B:
            lpT = jnp.pad(lpT, ((0, 0), (0, bp - B)))
        in_specs.append(lp_spec)
        inputs.append(lpT)
        out_shape.append(jax.ShapeDtypeStruct((1, bp), jnp.float32))
        out_specs.append(lp_spec)

    outs = pl.pallas_call(
        kernel,
        grid=(ntiles,),
        in_specs=in_specs,
        out_specs=tuple(out_specs),
        out_shape=tuple(out_shape),
        compiler_params=pltpu.CompilerParams(
            dimension_semantics=("parallel",)),          # v7x megacore sharding
    )(*inputs)

    y = outs[0][:, :B].T.astype(x.dtype)
    if not has_logpx:
        return y
    return y, outs[1][0, :B]


# ---------------------------------------------------------------------------
# Pure-JAX reference (mirrors the torch module exactly) for correctness checks.
# ---------------------------------------------------------------------------
def coupling_forward_ref(params, x, logpx=None, reverse=False, swap=False):
    d1 = params["d1"]
    if swap:
        x = jnp.concatenate([x[:, d1:], x[:, :d1]], axis=1)
    out_dim = x.shape[1] - d1
    x1, x2 = x[:, :d1], x[:, d1:]
    h = jax.nn.relu(x1 @ params["w1"].T + params["b1"][None, :])
    h = jax.nn.relu(h @ params["w2"].T + params["b2"][None, :])
    s_t = h @ params["w3"].T + params["b3"][None, :]
    scale = jax.nn.sigmoid(s_t[:, :out_dim] + 2.0)
    shift = s_t[:, out_dim:]
    logdetjac = jnp.sum(jnp.log(scale), axis=1, keepdims=True)
    if not reverse:
        y1 = x2 * scale + shift
        delta_logp = -logdetjac
    else:
        y1 = (x2 - shift) / scale
        delta_logp = logdetjac
    y = (jnp.concatenate([x1, y1], 1) if not swap
         else jnp.concatenate([y1, x1], 1))
    if logpx is None:
        return y
    return y, jnp.reshape(logpx, (-1,)) + jnp.reshape(delta_logp, (-1,))


if __name__ == "__main__":
    d = 4                  # feature dimension (2D-flow style, small)
    batch = 2
    params = init_coupling_params(d, intermediate_dim=64,
                                  w_init_sigma=0.001, seed=0)

    key = jax.random.PRNGKey(0)
    kx, kl = jax.random.split(key)
    x = jax.random.normal(kx, (batch, d), jnp.float32)
    logpx = jax.random.normal(kl, (batch, 1), jnp.float32)

    # forward with log-prob tracking
    y, new_lp = coupling_forward(params, x, logpx=logpx, reverse=False, swap=False)
    jax.block_until_ready((y, new_lp))

    # plain (logpx=None), reverse, and swapped paths
    y_only = coupling_forward(params, x, logpx=None)
    x_rec, _ = coupling_forward(params, y, logpx=logpx, reverse=True)
    y_sw, lp_sw = coupling_forward(params, x, logpx=logpx, swap=True)
    jax.block_until_ready((y_only, x_rec, y_sw, lp_sw))

    # correctness vs pure-JAX torch-equivalent reference
    y_ref, lp_ref = coupling_forward_ref(params, x, logpx=logpx)
    ysw_ref, lpsw_ref = coupling_forward_ref(params, x, logpx=logpx, swap=True)
    assert jnp.allclose(y, y_ref, atol=1e-5, rtol=1e-5)
    assert jnp.allclose(new_lp, lp_ref, atol=1e-5, rtol=1e-5)
    assert jnp.allclose(y_only, y_ref, atol=1e-5, rtol=1e-5)
    assert jnp.allclose(y_sw, ysw_ref, atol=1e-5, rtol=1e-5)
    assert jnp.allclose(lp_sw, lpsw_ref, atol=1e-5, rtol=1e-5)
    assert jnp.allclose(x_rec, x, atol=1e-5, rtol=1e-5)   # invertibility

    print("KERNEL_OK")
</pallas_src>

<mosaic_0001>
module attributes {stable_mosaic.version = 11 : i64} {
  func.func @_coupling_kernel(%arg0: i32, %arg1: memref<72x256xf32, #tpu.memory_space<vmem>>, %arg2: memref<4x128xf32, #tpu.memory_space<vmem>>, %arg3: memref<1x128xf32, #tpu.memory_space<vmem>>, %arg4: memref<4x128xf32, #tpu.memory_space<vmem>>, %arg5: memref<1x128xf32, #tpu.memory_space<vmem>>) attributes {dimension_semantics = [#tpu.dimension_semantics<parallel>], iteration_bounds = array<i64: 1>, scalar_prefetch = 0 : i64, scratch_operands = 0 : i64, tpu.core_type = #tpu.core_type<tc>, window_params = [{pipeline_mode = #tpu.pipeline_mode<synchronous>, transform_indices = @transform_0, window_bounds = array<i64: 72, 256>}, {transform_indices = @transform_1, window_bounds = array<i64: 4, 128>}, {transform_indices = @transform_2, window_bounds = array<i64: 1, 128>}, {transform_indices = @transform_3, window_bounds = array<i64: 4, 128>}, {transform_indices = @transform_4, window_bounds = array<i64: 1, 128>}]} {
    %c0 = arith.constant 0 : index
    %c0_0 = arith.constant 0 : index
    %0 = vector.load %arg2[%c0, %c0_0] : memref<4x128xf32, #tpu.memory_space<vmem>>, vector<4x128xf32>
    %1 = vector.extract_strided_slice %0 {offsets = [0, 0], sizes = [2, 128], strides = [1, 1]} : vector<4x128xf32> to vector<2x128xf32>
    %2 = vector.extract_strided_slice %0 {offsets = [2, 0], sizes = [2, 128], strides = [1, 1]} : vector<4x128xf32> to vector<2x128xf32>
    %c0_1 = arith.constant 0 : index
    %c2 = arith.constant 2 : index
    %3 = vector.load %arg1[%c0_1, %c2] : memref<72x256xf32, #tpu.memory_space<vmem>>, vector<64x1xf32>
    %c0_2 = arith.constant 0 : index
    %c0_3 = arith.constant 0 : index
    %4 = vector.load %arg1[%c0_2, %c0_3] : memref<72x256xf32, #tpu.memory_space<vmem>>, vector<64x1xf32>
    %5 = vector.extract_strided_slice %1 {offsets = [0, 0], sizes = [1, 128], strides = [1, 1]} : vector<2x128xf32> to vector<1x128xf32>
    %6 = vector.broadcast %4 : vector<64x1xf32> to vector<64x128xf32>
    %7 = vector.broadcast %5 : vector<1x128xf32> to vector<64x128xf32>
    %8 = arith.mulf %6, %7 : vector<64x128xf32>
    %c0_4 = arith.constant 0 : index
    %c1 = arith.constant 1 : index
    %9 = vector.load %arg1[%c0_4, %c1] : memref<72x256xf32, #tpu.memory_space<vmem>>, vector<64x1xf32>
    %10 = vector.extract_strided_slice %1 {offsets = [1, 0], sizes = [1, 128], strides = [1, 1]} : vector<2x128xf32> to vector<1x128xf32>
    %11 = vector.broadcast %9 : vector<64x1xf32> to vector<64x128xf32>
    %12 = vector.broadcast %10 : vector<1x128xf32> to vector<64x128xf32>
    %13 = arith.mulf %11, %12 : vector<64x128xf32>
    %14 = arith.addf %8, %13 : vector<64x128xf32>
    %15 = vector.broadcast %3 : vector<64x1xf32> to vector<64x128xf32>
    %16 = arith.addf %14, %15 : vector<64x128xf32>
    %cst = arith.constant 0.000000e+00 : f32
    %17 = vector.broadcast %cst : f32 to vector<64x128xf32>
    %18 = arith.maximumf %16, %17 : vector<64x128xf32>
    %c0_5 = arith.constant 0 : index
    %c128 = arith.constant 128 : index
    %19 = vector.load %arg1[%c0_5, %c128] : memref<72x256xf32, #tpu.memory_space<vmem>>, vector<64x64xf32>
    %c0_6 = arith.constant 0 : index
    %c192 = arith.constant 192 : index
    %20 = vector.load %arg1[%c0_6, %c192] : memref<72x256xf32, #tpu.memory_space<vmem>>, vector<64x1xf32>
    %cst_7 = arith.constant dense<0.000000e+00> : vector<64x128xf32>
    %21 = tpu.matmul %19, %18, %cst_7 {dimension_numbers = #tpu.dot_dimension_numbers<[1], [0], [0], [1], [0, 0, 1, 1], [], []>} : vector<64x64xf32>, vector<64x128xf32>, vector<64x128xf32> -> vector<64x128xf32>
    %22 = vector.broadcast %20 : vector<64x1xf32> to vector<64x128xf32>
    %23 = arith.addf %21, %22 : vector<64x128xf32>
    %cst_8 = arith.constant 0.000000e+00 : f32
    %24 = vector.broadcast %cst_8 : f32 to vector<64x128xf32>
    %25 = arith.maximumf %23, %24 : vector<64x128xf32>
    %c64 = arith.constant 64 : index
    %c0_9 = arith.constant 0 : index
    %26 = vector.load %arg1[%c64, %c0_9] : memref<72x256xf32, #tpu.memory_space<vmem>>, vector<8x64xf32>
    %c64_10 = arith.constant 64 : index
    %c64_11 = arith.constant 64 : index
    %27 = vector.load %arg1[%c64_10, %c64_11] : memref<72x256xf32, #tpu.memory_space<vmem>>, vector<8x1xf32>
    %cst_12 = arith.constant dense<0.000000e+00> : vector<8x128xf32>
    %28 = tpu.matmul %26, %25, %cst_12 {dimension_numbers = #tpu.dot_dimension_numbers<[1], [0], [0], [1], [0, 0, 1, 1], [], []>} : vector<8x64xf32>, vector<64x128xf32>, vector<8x128xf32> -> vector<8x128xf32>
    %29 = vector.broadcast %27 : vector<8x1xf32> to vector<8x128xf32>
    %30 = arith.addf %28, %29 : vector<8x128xf32>
    %31 = vector.extract_strided_slice %30 {offsets = [0, 0], sizes = [2, 128], strides = [1, 1]} : vector<8x128xf32> to vector<2x128xf32>
    %cst_13 = arith.constant 2.000000e+00 : f32
    %32 = vector.broadcast %cst_13 : f32 to vector<2x128xf32>
    %33 = arith.addf %31, %32 : vector<2x128xf32>
    %34 = vector.extract_strided_slice %30 {offsets = [2, 0], sizes = [2, 128], strides = [1, 1]} : vector<8x128xf32> to vector<2x128xf32>
    %35 = arith.negf %33 : vector<2x128xf32>
    %36 = math.exp %35 : vector<2x128xf32>
    %cst_14 = arith.constant 1.000000e+00 : f32
    %37 = vector.broadcast %cst_14 : f32 to vector<2x128xf32>
    %38 = arith.addf %37, %36 : vector<2x128xf32>
    %39 = arith.divf %37, %38 : vector<2x128xf32>
    %40 = arith.mulf %2, %39 : vector<2x128xf32>
    %41 = arith.addf %40, %34 : vector<2x128xf32>
    %c0_15 = arith.constant 0 : index
    %c0_16 = arith.constant 0 : index
    %42 = vector.load %arg4[%c0_15, %c0_16] : memref<4x128xf32, #tpu.memory_space<vmem>>, vector<2x128xf32>
    tpu.vector_store %arg4[%c0_15, %c0_16], %1 {strides = array<i32>} : memref<4x128xf32, #tpu.memory_space<vmem>>, vector<2x128xf32>,
    %c2_17 = arith.constant 2 : index
    %c0_18 = arith.constant 0 : index
    %43 = vector.load %arg4[%c2_17, %c0_18] : memref<4x128xf32, #tpu.memory_space<vmem>>, vector<2x128xf32>
    tpu.vector_store %arg4[%c2_17, %c0_18], %41 {strides = array<i32>} : memref<4x128xf32, #tpu.memory_space<vmem>>, vector<2x128xf32>,
    %cst_19 = arith.constant 0.000000e+00 : f32
    %44 = vector.broadcast %cst_19 : f32 to vector<2x128xf32>
    %45 = arith.subf %44, %33 : vector<2x128xf32>
    %cst_20 = arith.constant 0.000000e+00 : f32
    %46 = vector.broadcast %cst_20 : f32 to vector<2x128xf32>
    %47 = arith.maximumf %45, %46 : vector<2x128xf32>
    %48 = math.absf %33 : vector<2x128xf32>
    %cst_21 = arith.constant 0.000000e+00 : f32
    %49 = vector.broadcast %cst_21 : f32 to vector<2x128xf32>
    %50 = arith.subf %49, %48 : vector<2x128xf32>
    %51 = math.exp %50 : vector<2x128xf32>
    %cst_22 = arith.constant 1.000000e+00 : f32
    %52 = vector.broadcast %cst_22 : f32 to vector<2x128xf32>
    %53 = arith.addf %52, %51 : vector<2x128xf32>
    %54 = math.log %53 : vector<2x128xf32>
    %55 = arith.addf %47, %54 : vector<2x128xf32>
    %cst_23 = arith.constant 0.000000e+00 : f32
    %56 = vector.broadcast %cst_23 : f32 to vector<2x128xf32>
    %57 = arith.subf %56, %55 : vector<2x128xf32>
    %cst_24 = arith.constant dense<0.000000e+00> : vector<128xf32>
    %58 = vector.multi_reduction <add>, %57, %cst_24 [0] : vector<2x128xf32> to vector<128xf32>
    %59 = vector.shape_cast %58 : vector<128xf32> to vector<1x128xf32>
    %cst_25 = arith.constant 0.000000e+00 : f32
    %60 = vector.broadcast %cst_25 : f32 to vector<1x128xf32>
    %61 = arith.subf %60, %59 : vector<1x128xf32>
    %c0_26 = arith.constant 0 : index
    %c0_27 = arith.constant 0 : index
    %62 = vector.load %arg3[%c0_26, %c0_27] : memref<1x128xf32, #tpu.memory_space<vmem>>, vector<1x128xf32>
    %63 = arith.addf %62, %61 : vector<1x128xf32>
    %c0_28 = arith.constant 0 : index
    %c0_29 = arith.constant 0 : index
    %64 = vector.load %arg5[%c0_28, %c0_29] : memref<1x128xf32, #tpu.memory_space<vmem>>, vector<1x128xf32>
    tpu.vector_store %arg5[%c0_28, %c0_29], %63 {strides = array<i32>} : memref<1x128xf32, #tpu.memory_space<vmem>>, vector<1x128xf32>,
    return
  }
  func.func @transform_0(%arg0: i32) -> (i32, i32) {
    %c0_i32 = arith.constant 0 : i32
    %c0_i32_0 = arith.constant 0 : i32
    %c0_i32_1 = arith.constant 0 : i32
    return %c0_i32, %c0_i32_0 : i32, i32
  }
  func.func @transform_1(%arg0: i32) -> (i32, i32) {
    %c0_i32 = arith.constant 0 : i32
    %c0_i32_0 = arith.constant 0 : i32
    return %c0_i32, %arg0 : i32, i32
  }
  func.func @transform_2(%arg0: i32) -> (i32, i32) {
    %c0_i32 = arith.constant 0 : i32
    %c0_i32_0 = arith.constant 0 : i32
    return %c0_i32, %arg0 : i32, i32
  }
  func.func @transform_3(%arg0: i32) -> (i32, i32) {
    %c0_i32 = arith.constant 0 : i32
    %c0_i32_0 = arith.constant 0 : i32
    return %c0_i32, %arg0 : i32, i32
  }
  func.func @transform_4(%arg0: i32) -> (i32, i32) {
    %c0_i32 = arith.constant 0 : i32
    %c0_i32_0 = arith.constant 0 : i32
    return %c0_i32, %arg0 : i32, i32
  }
}

</mosaic_0001>

<llo_original>
// kernel: tpu_custom_call.1
$region0: #{tpu_custom_call.1}
  #allocation0 [shape = 'u32[]', space=smem, size = 0x4, offset = 0x4, fixed_abs, tag = 'smem constant byte address 0x4 - core index']
  #allocation1 [shape = 'u32[144,128]{1,0:T(1,128)}', space=vmem, size = 0x12000, scoped, tag = 'internal scratch']
  %s0 = inlined_call_operand.hbm [shape: f32[72,256], index: 0, kind: input, shape index: {}]
  %s1 = inlined_call_operand.hbm [shape: f32[4,128], index: 1, kind: input, shape index: {}]
  %s2 = inlined_call_operand.vmem [shape: f32[1,128], index: 2, kind: input, shape index: {}]
  %s3 = inlined_call_operand.hbm [shape: f32[4,128], index: 3, kind: output, shape index: {0}]
  %s4 = inlined_call_operand.hbm [shape: f32[1,128], index: 4, kind: output, shape index: {1}]
  %5 = xla_tuple %s3, %s4
  %s6 = sld [smem:[#allocation0]]
  $region38: #{tpu_custom_call.1} parent=0
    _
  %s8 = ssub.s32 1, %s6
  %s9 = scalar_select 0, %s8, %s6
  $region1: #{tpu_custom_call.1} parent=0
    #allocation2 [shape = 'u8[73728]{0}', space=vmem, size = 0x12000, scoped, tag = 'input window, operand 0, single buffered']
    #allocation3 [shape = 's32[1]{0}', space=sflag, size = 0x4, scoped, tag = 'scoped memory for tpu_custom_call.1']
    #allocation4 [shape = 's32[1]{0}', space=sflag, size = 0x4, scoped, tag = 'scoped memory for tpu_custom_call.1']
    #allocation5 [shape = 'u8[2048]{0}', space=vmem, size = 0x800, scoped, tag = 'input window, operand 1, single buffered']
    #allocation6 [shape = 's32[1]{0}', space=sflag, size = 0x4, scoped, tag = 'scoped memory for tpu_custom_call.1']
    #allocation7 [shape = 'u8[2048]{0}', space=vmem, size = 0x800, scoped, tag = 'output window, operand 0, single buffered']
    #allocation8 [shape = 'u8[512]{0}', space=vmem, size = 0x400, scoped, tag = 'output window, operand 1, single buffered']
    #allocation9 [shape = 's32[1]{0}', space=sflag, size = 0x4, scoped, tag = 'scoped memory for tpu_custom_call.1']
    %10 = vsyncpa [#allocation3], 0
    %11 = vsyncpa [#allocation6], 0
    %12 = vsyncpa [#allocation4], 0
    %13 = vsyncpa [#allocation9], 0
    // Predicated region
    $region2: #{tpu_custom_call.1} parent=1 // pred_check
      _
    $region3: #{tpu_custom_call.1} parent=1 // pred_check_branch
      %15 = sbr.rel (0) target = $region5
    $region4: #{tpu_custom_call.1} parent=1 // pred_region
      %s17 = ssub.s32 2304, 2304
      %18 = vsyncadd [#allocation3], %s17
      %s19 = sshll.u32 [#allocation2], 4
      %s20 = int_to_ptr.vmem [resolvable:$true] %s19
      %25 = dma.hbm_to_vmem [thread:$0]  %s0, 2304, %s20, [#allocation3], 256, 256, 16
    $region5: #{tpu_custom_call.1} parent=1 // pred_fallthru
      _
    // Predicated region
    $region6: #{tpu_custom_call.1} parent=1 // pred_check
      _
    $region7: #{tpu_custom_call.1} parent=1 // pred_check_branch
      %27 = sbr.rel (0) target = $region9
    $region8: #{tpu_custom_call.1} parent=1 // pred_region
      %s29 = ssub.s32 64, 64
      %30 = vsyncadd [#allocation6], %s29
      %s32 = sshll.u32 [#allocation5], 4
      %s33 = int_to_ptr.vmem [resolvable:$true] %s32
      %35 = dma.hbm_to_vmem [thread:$0]  %s1, 64, %s33, [#allocation6]
    $region9: #{tpu_custom_call.1} parent=1 // pred_fallthru
      _
    // Predicated region
    $region10: #{tpu_custom_call.1} parent=1 // pred_check
      _
    $region11: #{tpu_custom_call.1} parent=1 // pred_check_branch
      %37 = sbr.rel (0) target = $region13
    $region12: #{tpu_custom_call.1} parent=1 // pred_region
      _
    $region13: #{tpu_custom_call.1} parent=1 // pred_fallthru
      _
    // Predicated region
    $region14: #{tpu_custom_call.1} parent=1 // pred_check
      _
    $region15: #{tpu_custom_call.1} parent=1 // pred_check_branch
      %39 = sbr.rel (0) target = $region17
    $region16: #{tpu_custom_call.1} parent=1 // pred_region
      %40 = dma.done [#allocation3], 2304
    $region17: #{tpu_custom_call.1} parent=1 // pred_fallthru
      _
    // Predicated region
    $region18: #{tpu_custom_call.1} parent=1 // pred_check
      _
    $region19: #{tpu_custom_call.1} parent=1 // pred_check_branch
      %42 = sbr.rel (0) target = $region21
    $region20: #{tpu_custom_call.1} parent=1 // pred_region
      %43 = dma.done [#allocation6], 64
    $region21: #{tpu_custom_call.1} parent=1 // pred_fallthru
      _
    %v44 = vld [vmem:[#allocation5] sm:$0xf]
    %v45 = vld [vmem:[#allocation2] sm:$0xff]
    %v46 = vld [vmem:[#allocation2 + $0x10] sm:$0xff]
    %v47 = vld [vmem:[#allocation2 + $0x20] sm:$0xff]
    %v48 = vld [vmem:[#allocation2 + $0x30] sm:$0xff]
    %v49 = vld [vmem:[#allocation2 + $0x40] sm:$0xff]
    %v50 = vld [vmem:[#allocation2 + $0x50] sm:$0xff]
    %v51 = vld [vmem:[#allocation2 + $0x60] sm:$0xff]
    %v52 = vld [vmem:[#allocation2 + $0x70] sm:$0xff]
    %54 = vset.pattern.permute.xlu0 0
    %55 = vperm.xlu0 %54, %v45
    %v56 = vpop.permute.xlu0 %55
    %59 = vset.pattern.permute.xlu0 0
    %60 = vperm.xlu0 %59, %v46
    %v61 = vpop.permute.xlu0 %60
    %64 = vset.pattern.permute.xlu0 0
    %65 = vperm.xlu0 %64, %v47
    %v66 = vpop.permute.xlu0 %65
    %69 = vset.pattern.permute.xlu0 0
    %70 = vperm.xlu0 %69, %v48
    %v71 = vpop.permute.xlu0 %70
    %74 = vset.pattern.permute.xlu0 0
    %75 = vperm.xlu0 %74, %v49
    %v76 = vpop.permute.xlu0 %75
    %79 = vset.pattern.permute.xlu0 0
    %80 = vperm.xlu0 %79, %v50
    %v81 = vpop.permute.xlu0 %80
    %84 = vset.pattern.permute.xlu0 0
    %85 = vperm.xlu0 %84, %v51
    %v86 = vpop.permute.xlu0 %85
    %89 = vset.pattern.permute.xlu0 0
    %90 = vperm.xlu0 %89, %v52
    %v91 = vpop.permute.xlu0 %90
    %v93 = vlaneseq
    %v94 = vshrl.u32 %v93, 7
    %v95 = vsub.s32 0, %v94
    %v96 = vrot.slane %v44, %v95
    %v97 = vmul.f32 %v56, %v96
    %v98 = vmul.f32 %v61, %v96
    %v99 = vmul.f32 %v66, %v96
    %v100 = vmul.f32 %v71, %v96
    %v101 = vmul.f32 %v76, %v96
    %v102 = vmul.f32 %v81, %v96
    %v103 = vmul.f32 %v86, %v96
    %v104 = vmul.f32 %v91, %v96
    %105 = vset.pattern.permute.xlu0 1
    %106 = vperm.xlu0 %105, %v45
    %v107 = vpop.permute.xlu0 %106
    %109 = vset.pattern.permute.xlu0 1
    %110 = vperm.xlu0 %109, %v46
    %v111 = vpop.permute.xlu0 %110
    %113 = vset.pattern.permute.xlu0 1
    %114 = vperm.xlu0 %113, %v47
    %v115 = vpop.permute.xlu0 %114
    %117 = vset.pattern.permute.xlu0 1
    %118 = vperm.xlu0 %117, %v48
    %v119 = vpop.permute.xlu0 %118
    %121 = vset.pattern.permute.xlu0 1
    %122 = vperm.xlu0 %121, %v49
    %v123 = vpop.permute.xlu0 %122
    %125 = vset.pattern.permute.xlu0 1
    %126 = vperm.xlu0 %125, %v50
    %v127 = vpop.permute.xlu0 %126
    %129 = vset.pattern.permute.xlu0 1
    %130 = vperm.xlu0 %129, %v51
    %v131 = vpop.permute.xlu0 %130
    %133 = vset.pattern.permute.xlu0 1
    %134 = vperm.xlu0 %133, %v52
    %v135 = vpop.permute.xlu0 %134
    %v137 = vlaneseq
    %v138 = vshrl.u32 %v137, 7
    %v139 = vsub.s32 1, %v138
    %v140 = vrot.slane %v44, %v139
    %v141 = vmul.f32 %v107, %v140
    %v142 = vmul.f32 %v111, %v140
    %v143 = vmul.f32 %v115, %v140
    %v144 = vmul.f32 %v119, %v140
    %v145 = vmul.f32 %v123, %v140
    %v146 = vmul.f32 %v127, %v140
    %v147 = vmul.f32 %v131, %v140
    %v148 = vmul.f32 %v135, %v140
    %v149 = vadd.f32 %v97, %v141
    %v150 = vadd.f32 %v98, %v142
    %v151 = vadd.f32 %v99, %v143
    %v152 = vadd.f32 %v100, %v144
    %v153 = vadd.f32 %v101, %v145
    %v154 = vadd.f32 %v102, %v146
    %v155 = vadd.f32 %v103, %v147
    %v156 = vadd.f32 %v104, %v148
    %157 = vset.pattern.permute.xlu0 2
    %158 = vperm.xlu0 %157, %v45
    %v159 = vpop.permute.xlu0 %158
    %161 = vset.pattern.permute.xlu0 2
    %162 = vperm.xlu0 %161, %v46
    %v163 = vpop.permute.xlu0 %162
    %165 = vset.pattern.permute.xlu0 2
    %166 = vperm.xlu0 %165, %v47
    %v167 = vpop.permute.xlu0 %166
    %169 = vset.pattern.permute.xlu0 2
    %170 = vperm.xlu0 %169, %v48
    %v171 = vpop.permute.xlu0 %170
    %173 = vset.pattern.permute.xlu0 2
    %174 = vperm.xlu0 %173, %v49
    %v175 = vpop.permute.xlu0 %174
    %177 = vset.pattern.permute.xlu0 2
    %178 = vperm.xlu0 %177, %v50
    %v179 = vpop.permute.xlu0 %178
    %181 = vset.pattern.permute.xlu0 2
    %182 = vperm.xlu0 %181, %v51
    %v183 = vpop.permute.xlu0 %182
    %185 = vset.pattern.permute.xlu0 2
    %186 = vperm.xlu0 %185, %v52
    %v187 = vpop.permute.xlu0 %186
    %v189 = vadd.f32 %v149, %v159
    %v190 = vadd.f32 %v150, %v163
    %v191 = vadd.f32 %v151, %v167
    %v192 = vadd.f32 %v152, %v171
    %v193 = vadd.f32 %v153, %v175
    %v194 = vadd.f32 %v154, %v179
    %v195 = vadd.f32 %v155, %v183
    %v196 = vadd.f32 %v156, %v187
    %v197 = vmax.f32 %v189, 0.0
    %v198 = vmax.f32 %v190, 0.0
    %v199 = vmax.f32 %v191, 0.0
    %v200 = vmax.f32 %v192, 0.0
    %v201 = vmax.f32 %v193, 0.0
    %v202 = vmax.f32 %v194, 0.0
    %v203 = vmax.f32 %v195, 0.0
    %v204 = vmax.f32 %v196, 0.0
    %v205 = vld [vmem:[#allocation2 + $0x8] sm:$0xff]
    %v206 = vld [vmem:[#allocation2 + $0x18] sm:$0xff]
    %v207 = vld [vmem:[#allocation2 + $0x28] sm:$0xff]
    %v208 = vld [vmem:[#allocation2 + $0x38] sm:$0xff]
    %v209 = vld [vmem:[#allocation2 + $0x48] sm:$0xff]
    %v210 = vld [vmem:[#allocation2 + $0x58] sm:$0xff]
    %v211 = vld [vmem:[#allocation2 + $0x68] sm:$0xff]
    %v212 = vld [vmem:[#allocation2 + $0x78] sm:$0xff]
    %214 = vset.pattern.permute.xlu0 64
    %215 = vperm.xlu0 %214, %v205
    %v216 = vpop.permute.xlu0 %215
    %219 = vset.pattern.permute.xlu0 64
    %220 = vperm.xlu0 %219, %v206
    %v221 = vpop.permute.xlu0 %220
    %224 = vset.pattern.permute.xlu0 64
    %225 = vperm.xlu0 %224, %v207
    %v226 = vpop.permute.xlu0 %225
    %229 = vset.pattern.permute.xlu0 64
    %230 = vperm.xlu0 %229, %v208
    %v231 = vpop.permute.xlu0 %230
    %234 = vset.pattern.permute.xlu0 64
    %235 = vperm.xlu0 %234, %v209
    %v236 = vpop.permute.xlu0 %235
    %239 = vset.pattern.permute.xlu0 64
    %240 = vperm.xlu0 %239, %v210
    %v241 = vpop.permute.xlu0 %240
    %244 = vset.pattern.permute.xlu0 64
    %245 = vperm.xlu0 %244, %v211
    %v246 = vpop.permute.xlu0 %245
    %249 = vset.pattern.permute.xlu0 64
    %250 = vperm.xlu0 %249, %v212
    %v251 = vpop.permute.xlu0 %250
    %vm253 = vcmask 523264
    %v254 = vsel %vm253, %v205, 0
    %v256 = vsel %vm253, %v206, 0
    %v258 = vsel %vm253, %v207, 0
    %v260 = vsel %vm253, %v208, 0
    %v262 = vsel %vm253, %v209, 0
    %v264 = vsel %vm253, %v210, 0
    %v266 = vsel %vm253, %v211, 0
    %v268 = vsel %vm253, %v212, 0
    %270 = vmatprep.subr.mxu0 0.0
    %271 = vmatpush1.msra.mxu0 %v197
    %272 = vmatprep.subr.mxu0 0.0
    %273 = vmatpush1.msra.mxu0 %v198
    %274 = vmatprep.subr.mxu0 0.0
    %275 = vmatpush1.msra.mxu0 %v199
    %276 = vmatprep.subr.mxu0 0.0
    %277 = vmatpush1.msra.mxu0 %v200
    %278 = vmatprep.subr.mxu0 0.0
    %279 = vmatpush1.msra.mxu0 %v201
    %280 = vmatprep.subr.mxu0 0.0
    %281 = vmatpush1.msra.mxu0 %v202
    %282 = vmatprep.subr.mxu0 0.0
    %283 = vmatpush1.msra.mxu0 %v203
    %284 = vmatprep.subr.mxu0 0.0
    %285 = vmatpush1.msra.mxu0 %v204
    %286 = vmatprep.subr.mxu0 0.0
    %287 = vmatpush1.msra.mxu0 0.0
    %288 = vmatprep.subr.mxu0 0.0
    %289 = vmatpush1.msra.mxu0 0.0
    %290 = vmatprep.subr.mxu0 0.0
    %291 = vmatpush1.msra.mxu0 0.0
    %292 = vmatprep.subr.mxu0 0.0
    %293 = vmatpush1.msra.mxu0 0.0
    %294 = vmatprep.subr.mxu0 0.0
    %295 = vmatpush1.msra.mxu0 0.0
    %296 = vmatprep.subr.mxu0 0.0
    %297 = vmatpush1.msra.mxu0 0.0
    %298 = vmatprep.subr.mxu0 0.0
    %299 = vmatpush1.msra.mxu0 0.0
    %300 = vmatprep.subr.mxu0 0.0
    %301 = vmatpush1.msra.mxu0 0.0
    %302 = vmatprep.subr.mxu0 0.0
    %303 = vmatpush1.msra.mxu0 0.0
    %304 = vmatprep.subr.mxu0 0.0
    %305 = vmatpush1.msra.mxu0 0.0
    %306 = vmatprep.subr.mxu0 0.0
    %307 = vmatpush1.msra.mxu0 0.0
    %308 = vmatprep.subr.mxu0 0.0
    %309 = vmatpush1.msra.mxu0 0.0
    %310 = vmatprep.subr.mxu0 0.0
    %311 = vmatpush1.msra.mxu0 0.0
    %312 = vmatprep.subr.mxu0 0.0
    %313 = vmatpush1.msra.mxu0 0.0
    %314 = vmatprep.subr.mxu0 0.0
    %315 = vmatpush1.msra.mxu0 0.0
    %316 = vmatprep.subr.mxu0 0.0
    %317 = vmatpush1.msra.mxu0 0.0
    %318 = vmatprep.subr.mxu0 0.0
    %319 = vmatpush1.msra.mxu0 0.0
    %320 = vmatprep.subr.mxu0 0.0
    %321 = vmatpush1.msra.mxu0 0.0
    %322 = vmatprep.subr.mxu0 0.0
    %323 = vmatpush1.msra.mxu0 0.0
    %324 = vmatprep.subr.mxu0 0.0
    %325 = vmatpush1.msra.mxu0 0.0
    %326 = vmatprep.subr.mxu0 0.0
    %327 = vmatpush1.msra.mxu0 0.0
    %328 = vmatprep.subr.mxu0 0.0
    %329 = vmatpush1.msra.mxu0 0.0
    %330 = vmatprep.subr.mxu0 0.0
    %331 = vmatpush1.msra.mxu0 0.0
    %332 = vmatprep.subr.mxu0 0.0
    %333 = vmatpush1.msra.mxu0 0.0
    %334 = vmatprep.mubr.f32.mxu0 0.0
    %335 = vmatmul.mubr.f32.gmra.mrb[0].mxu0 %v254
    %v336 = vpop.f32.mrb[0].mxu0
    %v337 = vadd.f32 %v216, %v336
    %v338 = vpop.f32.mrb[0].mxu0
    %339 = vmatprep.mubr.f32.mxu0 0.0
    %340 = vmatmul.mubr.f32.gmra.mrb[0].mxu0 %v256
    %v341 = vpop.f32.mrb[0].mxu0
    %v342 = vadd.f32 %v221, %v341
    %v343 = vpop.f32.mrb[0].mxu0
    %344 = vmatprep.mubr.f32.mxu0 0.0
    %345 = vmatmul.mubr.f32.gmra.mrb[0].mxu0 %v258
    %v346 = vpop.f32.mrb[0].mxu0
    %v347 = vadd.f32 %v226, %v346
    %v348 = vpop.f32.mrb[0].mxu0
    %349 = vmatprep.mubr.f32.mxu0 0.0
    %350 = vmatmul.mubr.f32.gmra.mrb[0].mxu0 %v260
    %v351 = vpop.f32.mrb[0].mxu0
    %v352 = vadd.f32 %v231, %v351
    %v353 = vpop.f32.mrb[0].mxu0
    %354 = vmatprep.mubr.f32.mxu0 0.0
    %355 = vmatmul.mubr.f32.gmra.mrb[0].mxu0 %v262
    %v356 = vpop.f32.mrb[0].mxu0
    %v357 = vadd.f32 %v236, %v356
    %v358 = vpop.f32.mrb[0].mxu0
    %359 = vmatprep.mubr.f32.mxu0 0.0
    %360 = vmatmul.mubr.f32.gmra.mrb[0].mxu0 %v264
    %v361 = vpop.f32.mrb[0].mxu0
    %v362 = vadd.f32 %v241, %v361
    %v363 = vpop.f32.mrb[0].mxu0
    %364 = vmatprep.mubr.f32.mxu0 0.0
    %365 = vmatmul.mubr.f32.gmra.mrb[0].mxu0 %v266
    %v366 = vpop.f32.mrb[0].mxu0
    %v367 = vadd.f32 %v246, %v366
    %v368 = vpop.f32.mrb[0].mxu0
    %369 = vmatprep.mubr.f32.mxu0 0.0
    %370 = vmatmul.mubr.f32.gmra.mrb[0].mxu0 %v268
    %v371 = vpop.f32.mrb[0].mxu0
    %v372 = vadd.f32 %v251, %v371
    %v373 = vpop.f32.mrb[0].mxu0
    %374 = vdwg.mxu0
    %v375 = vmax.f32 %v337, 0.0
    %v376 = vmax.f32 %v342, 0.0
    %v377 = vmax.f32 %v347, 0.0
    %v378 = vmax.f32 %v352, 0.0
    %v379 = vmax.f32 %v357, 0.0
    %v380 = vmax.f32 %v362, 0.0
    %v381 = vmax.f32 %v367, 0.0
    %v382 = vmax.f32 %v372, 0.0
    %v383 = vld [vmem:[#allocation2 + $0x80] sm:$0xff]
    %385 = vset.pattern.permute.xlu0 64
    %386 = vperm.xlu0 %385, %v383
    %v387 = vpop.permute.xlu0 %386
    %v389 = vsel %vm253, %v383, 0
    %391 = vmatprep.subr.mxu0 0.0
    %392 = vmatpush1.msra.mxu0 %v375
    %393 = vmatprep.subr.mxu0 0.0
    %394 = vmatpush1.msra.mxu0 %v376
    %395 = vmatprep.subr.mxu0 0.0
    %396 = vmatpush1.msra.mxu0 %v377
    %397 = vmatprep.subr.mxu0 0.0
    %398 = vmatpush1.msra.mxu0 %v378
    %399 = vmatprep.subr.mxu0 0.0
    %400 = vmatpush1.msra.mxu0 %v379
    %401 = vmatprep.subr.mxu0 0.0
    %402 = vmatpush1.msra.mxu0 %v380
    %403 = vmatprep.subr.mxu0 0.0
    %404 = vmatpush1.msra.mxu0 %v381
    %405 = vmatprep.subr.mxu0 0.0
    %406 = vmatpush1.msra.mxu0 %v382
    %407 = vmatprep.subr.mxu0 0.0
    %408 = vmatpush1.msra.mxu0 0.0
    %409 = vmatprep.subr.mxu0 0.0
    %410 = vmatpush1.msra.mxu0 0.0
    %411 = vmatprep.subr.mxu0 0.0
    %412 = vmatpush1.msra.mxu0 0.0
    %413 = vmatprep.subr.mxu0 0.0
    %414 = vmatpush1.msra.mxu0 0.0
    %415 = vmatprep.subr.mxu0 0.0
    %416 = vmatpush1.msra.mxu0 0.0
    %417 = vmatprep.subr.mxu0 0.0
    %418 = vmatpush1.msra.mxu0 0.0
    %419 = vmatprep.subr.mxu0 0.0
    %420 = vmatpush1.msra.mxu0 0.0
    %421 = vmatprep.subr.mxu0 0.0
    %422 = vmatpush1.msra.mxu0 0.0
    %423 = vmatprep.subr.mxu0 0.0
    %424 = vmatpush1.msra.mxu0 0.0
    %425 = vmatprep.subr.mxu0 0.0
    %426 = vmatpush1.msra.mxu0 0.0
    %427 = vmatprep.subr.mxu0 0.0
    %428 = vmatpush1.msra.mxu0 0.0
    %429 = vmatprep.subr.mxu0 0.0
    %430 = vmatpush1.msra.mxu0 0.0
    %431 = vmatprep.subr.mxu0 0.0
    %432 = vmatpush1.msra.mxu0 0.0
    %433 = vmatprep.subr.mxu0 0.0
    %434 = vmatpush1.msra.mxu0 0.0
    %435 = vmatprep.subr.mxu0 0.0
    %436 = vmatpush1.msra.mxu0 0.0
    %437 = vmatprep.subr.mxu0 0.0
    %438 = vmatpush1.msra.mxu0 0.0
    %439 = vmatprep.subr.mxu0 0.0
    %440 = vmatpush1.msra.mxu0 0.0
    %441 = vmatprep.subr.mxu0 0.0
    %442 = vmatpush1.msra.mxu0 0.0
    %443 = vmatprep.subr.mxu0 0.0
    %444 = vmatpush1.msra.mxu0 0.0
    %445 = vmatprep.subr.mxu0 0.0
    %446 = vmatpush1.msra.mxu0 0.0
    %447 = vmatprep.subr.mxu0 0.0
    %448 = vmatpush1.msra.mxu0 0.0
    %449 = vmatprep.subr.mxu0 0.0
    %450 = vmatpush1.msra.mxu0 0.0
    %451 = vmatprep.subr.mxu0 0.0
    %452 = vmatpush1.msra.mxu0 0.0
    %453 = vmatprep.subr.mxu0 0.0
    %454 = vmatpush1.msra.mxu0 0.0
    %455 = vmatprep.mubr.f32.mxu0 0.0
    %456 = vmatmul.mubr.f32.gmra.mrb[0].mxu0 %v389
    %v457 = vpop.f32.mrb[0].mxu0
    %v458 = vadd.f32 %v387, %v457
    %v459 = vpop.f32.mrb[0].mxu0
    %460 = vdwg.mxu0
    %v461 = vadd.f32 %v458, 2.0
    %v462 = vxor.u32 %v461, 2147483648
    %v463 = vmul.f32 %v462, 1.442695
    %v464 = vpow.pop %v463
    %v465 = vadd.f32 %v464, 1.0
    %v466 = vrcp.pop %v465
    %v467 = vmul.f32 1.0, %v466
    %v469 = vrot.slane %v467, 6
    %v471 = vmul.f32 %v44, %v469
    %v472 = vadd.f32 %v471, %v458
    %473 = vst [vmem:[#allocation7] sm:$0x3] %v44
    %474 = vst [vmem:[#allocation7] sm:$0xc] %v472
    %v475 = vsub.f32 0.0, %v461
    %v476 = vmax.f32 %v475, 0.0
    %v477 = vand.u32 2147483647, %v461
    %v478 = vsub.f32 0.0, %v477
    %v479 = vmul.f32 %v478, 1.442695
    %v480 = vpow.pop %v479
    %v481 = vadd.f32 %v480, 1.0
    %v482 = vlog2.pop %v481
    %v483 = vmul.f32 %v482, 0.6931472
    %v484 = vadd.f32 %v476, %v483
    %v485 = vsub.f32 0.0, %v484
    %vm486 = vcmask 1041408
    %v487 = vsel %vm486, %v485, 0.0
    %v488 = vrot.slane %v487, 4
    %v489 = vadd.f32 %v487, %v488
    %v490 = vrot.slane %v489, 2
    %v491 = vadd.f32 %v489, %v490
    %v492 = vrot.slane %v491, 1
    %v493 = vadd.f32 %v491, %v492
    %v494 = vsub.f32 0.0, %v493
    %v495 = vld [vmem:[%s2] sm:$0x1]
    %v496 = vadd.f32 %v495, %v494
    %497 = vst [vmem:[#allocation8] sm:$0x1] %v496
    // Predicated region
    $region22: #{tpu_custom_call.1} parent=1 // pred_check
      _
    $region23: #{tpu_custom_call.1} parent=1 // pred_check_branch
      %499 = sbr.rel (0) target = $region25
    $region24: #{tpu_custom_call.1} parent=1 // pred_region
      %s501 = ssub.s32 64, 64
      %502 = vsyncadd [#allocation4], %s501
      %s504 = sshll.u32 [#allocation7], 4
      %s505 = int_to_ptr.vmem [resolvable:$true] %s504
      %507 = dma.vmem_to_hbm [thread:$0]  %s505, 64, %s3, [#allocation4]
    $region25: #{tpu_custom_call.1} parent=1 // pred_fallthru
      _
    // Predicated region
    $region26: #{tpu_custom_call.1} parent=1 // pred_check
      _
    $region27: #{tpu_custom_call.1} parent=1 // pred_check_branch
      %509 = sbr.rel (0) target = $region29
    $region28: #{tpu_custom_call.1} parent=1 // pred_region
      %s511 = ssub.s32 16, 16
      %512 = vsyncadd [#allocation9], %s511
      %s514 = sshll.u32 [#allocation8], 4
      %s515 = int_to_ptr.vmem [resolvable:$true] %s514
      %517 = dma.vmem_to_hbm [thread:$0]  %s515, 16, %s4, [#allocation9]
    $region29: #{tpu_custom_call.1} parent=1 // pred_fallthru
      _
    // Predicated region
    $region30: #{tpu_custom_call.1} parent=1 // pred_check
      _
    $region31: #{tpu_custom_call.1} parent=1 // pred_check_branch
      %519 = sbr.rel (0) target = $region33
    $region32: #{tpu_custom_call.1} parent=1 // pred_region
      %520 = dma.done [#allocation4], 64
    $region33: #{tpu_custom_call.1} parent=1 // pred_fallthru
      _
    // Predicated region
    $region34: #{tpu_custom_call.1} parent=1 // pred_check
      _
    $region35: #{tpu_custom_call.1} parent=1 // pred_check_branch
      %522 = sbr.rel (0) target = $region37
    $region36: #{tpu_custom_call.1} parent=1 // pred_region
      %523 = dma.done [#allocation9], 16
    $region37: #{tpu_custom_call.1} parent=1 // pred_fallthru
      _
    %524 = vsyncpa [#allocation3], 1
    %525 = vsyncpa [#allocation6], 1
    %526 = vsyncpa [#allocation4], 1
    %527 = vsyncpa [#allocation9], 1

</llo_original>
